<compile_context>
chip_gen: v7x
topology: tpu7x:2x2x1
jax: 0.10.0
libtpu: 0.0.40
codegen_flags: <defaults>
</compile_context>

<pallas_src>
import jax
import jax.numpy as jnp
from jax.experimental import pallas as pl
from jax.experimental.pallas import tpu as pltpu

_SUBLANE = 8
_MIB = 1024 * 1024


def _round_up(x, m):
    return ((x + m - 1) // m) * m


def mlp_kernel(x_ref, w1_ref, b1_ref, w2_ref, b2_ref, latent_ref, out_ref):
    # fc1 + ReLU, all f32 (DMA-bound regime: f32 MXU operands cost nothing here and
    # keep the result tight against the f32 PyTorch reference).
    h = jnp.dot(x_ref[...], w1_ref[...],
                preferred_element_type=jnp.float32,
                precision=jax.lax.Precision.HIGHEST)
    h = jnp.maximum(h + b1_ref[...], 0.0)
    latent_ref[...] = h.astype(latent_ref.dtype)
    # fc2 + sigmoid.
    logits = jnp.dot(h, w2_ref[...],
                     preferred_element_type=jnp.float32,
                     precision=jax.lax.Precision.HIGHEST) + b2_ref[...]
    out_ref[...] = jax.nn.sigmoid(logits).astype(out_ref.dtype)


def _default_vmem_budget_bytes():
    # ~48 MiB of headroomed budget on 64 MiB parts (v7x), ~96 MiB on 128 MiB parts
    # (v5e/v6e). Falls back to the v7x-safe value if the query is unavailable.
    try:
        cap = pltpu.get_tpu_info().vmem_capacity_bytes
        return 96 * _MIB if cap > 64 * _MIB else 48 * _MIB
    except Exception:
        return 48 * _MIB


def simple_mlp_forward(x, w1, b1, w2, b2, *, batch_tile=256, vmem_budget_bytes=None):
    """Fused SimpleMLP forward.

    x:  (B, F) float32
    w1: (F, H), b1: (H,) or (1, H)
    w2: (H, C), b2: (C,) or (1, C)
    Returns (tab_latent (B, H) f32, sigmoid_logits (B, C) f32).
    """
    B, F = x.shape
    H = w1.shape[1]
    C = w2.shape[1]

    x = x.astype(jnp.float32)
    w1 = w1.astype(jnp.float32)
    w2 = w2.astype(jnp.float32)
    b1 = b1.reshape(1, H).astype(jnp.float32)
    b2 = b2.reshape(1, C).astype(jnp.float32)

    if vmem_budget_bytes is None:
        vmem_budget_bytes = _default_vmem_budget_bytes()

    # Batch tile: multiple of 8 (sublane). Small enough that the grid has several
    # steps (pipeline overlap + v7x 2-TC sharding), large enough to amortize the
    # ~0.35 us per-step overhead.
    bt = min(batch_tile, _round_up(pl.cdiv(B, 8), _SUBLANE))
    bt = max(_SUBLANE, _round_up(bt, _SUBLANE))

    def vmem_bytes(t):
        io = 2 * t * (F + H + C) * 4            # x / latent / out blocks (double-buffered)
        wts = 2 * (F * H + H * C + H + C) * 4   # resident weights + biases (double-buffered specs)
        tmp = 2 * t * (H + C) * 4               # in-kernel f32 temporaries (h, logits)
        return io + wts + tmp

    while bt > _SUBLANE and vmem_bytes(bt) > vmem_budget_bytes:
        bt = _round_up(bt // 2, _SUBLANE)
    # TODO(synk): if the resident (F, H) weight block alone approaches the VMEM budget
    # (v7x: ~32 MiB double-buffered), add a K-tiling grid axis with an f32 accumulator.

    grid = (pl.cdiv(B, bt),)  # boundary block masked by Pallas: no batch pad / slice

    cost = pl.CostEstimate(
        flops=2 * B * F * H + 2 * B * H * C,
        transcendentals=B * C,  # sigmoid
        bytes_accessed=4 * (B * F + F * H + H * C + H + C + B * H + B * C),
    )

    latent, probs = pl.pallas_call(
        mlp_kernel,
        out_shape=(jax.ShapeDtypeStruct((B, H), jnp.float32),
                   jax.ShapeDtypeStruct((B, C), jnp.float32)),
        grid_spec=pl.GridSpec(
            grid=grid,
            in_specs=[
                pl.BlockSpec((bt, F), lambda i: (i, 0)),  # x tile (F = full dim)
                pl.BlockSpec((F, H), lambda i: (0, 0)),   # w1 (constant block -> fetched once)
                pl.BlockSpec((1, H), lambda i: (0, 0)),   # b1
                pl.BlockSpec((H, C), lambda i: (0, 0)),   # w2
                pl.BlockSpec((1, C), lambda i: (0, 0)),   # b2
            ],
            out_specs=[
                pl.BlockSpec((bt, H), lambda i: (i, 0)),  # tab_latent (unpadded)
                pl.BlockSpec((bt, C), lambda i: (i, 0)),  # sigmoid(fc2) (unpadded)
            ],
        ),
        compiler_params=pltpu.CompilerParams(
            dimension_semantics=("parallel",),            # megacore-shard batch tiles
            vmem_limit_bytes=int(min(max(2 * vmem_bytes(bt), 32 * _MIB),
                                     vmem_budget_bytes)),
        ),
        cost_estimate=cost,
    )(x, w1, b1, w2, b2)

    return latent, probs


def init_params(key, n_cont_features, tab_latent_size, n_classes):
    """Deterministic init mimicking nn.Linear default (U[-1/sqrt(fan_in), 1/sqrt(fan_in)])."""
    k1, k2, k3, k4 = jax.random.split(key, 4)
    lim1 = 1.0 / (n_cont_features ** 0.5)
    lim2 = 1.0 / (tab_latent_size ** 0.5)
    w1 = jax.random.uniform(k1, (n_cont_features, tab_latent_size), jnp.float32, -lim1, lim1)
    b1 = jax.random.uniform(k2, (1, tab_latent_size), jnp.float32, -lim1, lim1)
    w2 = jax.random.uniform(k3, (tab_latent_size, n_classes), jnp.float32, -lim2, lim2)
    b2 = jax.random.uniform(k4, (1, n_classes), jnp.float32, -lim2, lim2)
    return w1, b1, w2, b2


def _reference(x, w1, b1, w2, b2):
    latent = jnp.maximum(x @ w1 + b1, 0.0)
    return latent, jax.nn.sigmoid(latent @ w2 + b2)


if __name__ == "__main__":
    # Shapes implied by the module: x is (batch, n_cont_features),
    # tab_latent_size = n_cont_features + 4, output dim = len(unique_values).
    n_cont_features = 16
    tab_latent_size = n_cont_features + 4   # 20
    n_classes = 3                           # len(unique_values)

    key = jax.random.PRNGKey(0)
    kx, kp, kx2 = jax.random.split(key, 3)
    w1, b1, w2, b2 = init_params(kp, n_cont_features, tab_latent_size, n_classes)

    # Small case (single grid step).
    x_small = jax.random.normal(kx, (8, n_cont_features), jnp.float32)
    lat_s, prob_s = simple_mlp_forward(x_small, w1, b1, w2, b2)
    jax.block_until_ready((lat_s, prob_s))
    ref_lat_s, ref_prob_s = _reference(x_small, w1, b1, w2, b2)
    assert lat_s.shape == (8, tab_latent_size) and prob_s.shape == (8, n_classes)
    assert jnp.allclose(lat_s, ref_lat_s, atol=1e-5, rtol=1e-4)
    assert jnp.allclose(prob_s, ref_prob_s, atol=1e-5, rtol=1e-4)

    # Batch that is not a multiple of the tile: exercises the masked boundary block
    # and the multi-step pipelined grid (no explicit padding / slicing anywhere).
    x_big = jax.random.normal(kx2, (200, n_cont_features), jnp.float32)
    lat_b, prob_b = simple_mlp_forward(x_big, w1, b1, w2, b2)
    jax.block_until_ready((lat_b, prob_b))
    ref_lat_b, ref_prob_b = _reference(x_big, w1, b1, w2, b2)
    assert lat_b.shape == (200, tab_latent_size) and prob_b.shape == (200, n_classes)
    assert jnp.allclose(lat_b, ref_lat_b, atol=1e-5, rtol=1e-4)
    assert jnp.allclose(prob_b, ref_prob_b, atol=1e-5, rtol=1e-4)

    print("KERNEL_OK")
</pallas_src>

<mosaic_0001>
module attributes {stable_mosaic.version = 11 : i64} {
  func.func @mlp_kernel(%arg0: i32, %arg1: memref<8x16xf32, #tpu.memory_space<vmem>>, %arg2: memref<16x20xf32, #tpu.memory_space<vmem>>, %arg3: memref<1x20xf32, #tpu.memory_space<vmem>>, %arg4: memref<20x3xf32, #tpu.memory_space<vmem>>, %arg5: memref<1x3xf32, #tpu.memory_space<vmem>>, %arg6: memref<8x20xf32, #tpu.memory_space<vmem>>, %arg7: memref<8x3xf32, #tpu.memory_space<vmem>>) attributes {dimension_semantics = [#tpu.dimension_semantics<parallel>], iteration_bounds = array<i64: 1>, scalar_prefetch = 0 : i64, scratch_operands = 0 : i64, tpu.core_type = #tpu.core_type<tc>, window_params = [{transform_indices = @transform_0, window_bounds = array<i64: 8, 16>}, {pipeline_mode = #tpu.pipeline_mode<synchronous>, transform_indices = @transform_1, window_bounds = array<i64: 16, 20>}, {pipeline_mode = #tpu.pipeline_mode<synchronous>, transform_indices = @transform_2, window_bounds = array<i64: 1, 20>}, {pipeline_mode = #tpu.pipeline_mode<synchronous>, transform_indices = @transform_3, window_bounds = array<i64: 20, 3>}, {pipeline_mode = #tpu.pipeline_mode<synchronous>, transform_indices = @transform_4, window_bounds = array<i64: 1, 3>}, {transform_indices = @transform_5, window_bounds = array<i64: 8, 20>}, {transform_indices = @transform_6, window_bounds = array<i64: 8, 3>}]} {
    %c0 = arith.constant 0 : index
    %c0_0 = arith.constant 0 : index
    %0 = vector.load %arg1[%c0, %c0_0] : memref<8x16xf32, #tpu.memory_space<vmem>>, vector<8x16xf32>
    %c0_1 = arith.constant 0 : index
    %c0_2 = arith.constant 0 : index
    %1 = vector.load %arg2[%c0_1, %c0_2] : memref<16x20xf32, #tpu.memory_space<vmem>>, vector<16x20xf32>
    %cst = arith.constant dense<0.000000e+00> : vector<8x20xf32>
    %2 = tpu.matmul %0, %1, %cst {dimension_numbers = #tpu.dot_dimension_numbers<[1], [0], [0], [1], [0, 0, 1, 1], [], []>, precision = #tpu.contract_precision<fp32>} : vector<8x16xf32>, vector<16x20xf32>, vector<8x20xf32> -> vector<8x20xf32>
    %c0_3 = arith.constant 0 : index
    %c0_4 = arith.constant 0 : index
    %3 = vector.load %arg3[%c0_3, %c0_4] : memref<1x20xf32, #tpu.memory_space<vmem>>, vector<1x20xf32>
    %4 = vector.broadcast %3 : vector<1x20xf32> to vector<8x20xf32>
    %5 = arith.addf %2, %4 : vector<8x20xf32>
    %cst_5 = arith.constant 0.000000e+00 : f32
    %6 = vector.broadcast %cst_5 : f32 to vector<8x20xf32>
    %7 = arith.maximumf %5, %6 : vector<8x20xf32>
    %c0_6 = arith.constant 0 : index
    %c0_7 = arith.constant 0 : index
    %8 = vector.load %arg6[%c0_6, %c0_7] : memref<8x20xf32, #tpu.memory_space<vmem>>, vector<8x20xf32>
    tpu.vector_store %arg6[%c0_6, %c0_7], %7 {strides = array<i32>} : memref<8x20xf32, #tpu.memory_space<vmem>>, vector<8x20xf32>,
    %c0_8 = arith.constant 0 : index
    %c0_9 = arith.constant 0 : index
    %9 = vector.load %arg4[%c0_8, %c0_9] : memref<20x3xf32, #tpu.memory_space<vmem>>, vector<20x3xf32>
    %cst_10 = arith.constant dense<0.000000e+00> : vector<8x3xf32>
    %10 = tpu.matmul %7, %9, %cst_10 {dimension_numbers = #tpu.dot_dimension_numbers<[1], [0], [0], [1], [0, 0, 1, 1], [], []>, precision = #tpu.contract_precision<fp32>} : vector<8x20xf32>, vector<20x3xf32>, vector<8x3xf32> -> vector<8x3xf32>
    %c0_11 = arith.constant 0 : index
    %c0_12 = arith.constant 0 : index
    %11 = vector.load %arg5[%c0_11, %c0_12] : memref<1x3xf32, #tpu.memory_space<vmem>>, vector<1x3xf32>
    %12 = vector.broadcast %11 : vector<1x3xf32> to vector<8x3xf32>
    %13 = arith.addf %10, %12 : vector<8x3xf32>
    %14 = arith.negf %13 : vector<8x3xf32>
    %15 = math.exp %14 : vector<8x3xf32>
    %cst_13 = arith.constant 1.000000e+00 : f32
    %16 = vector.broadcast %cst_13 : f32 to vector<8x3xf32>
    %17 = arith.addf %16, %15 : vector<8x3xf32>
    %18 = arith.divf %16, %17 : vector<8x3xf32>
    %c0_14 = arith.constant 0 : index
    %c0_15 = arith.constant 0 : index
    %19 = vector.load %arg7[%c0_14, %c0_15] : memref<8x3xf32, #tpu.memory_space<vmem>>, vector<8x3xf32>
    tpu.vector_store %arg7[%c0_14, %c0_15], %18 {strides = array<i32>} : memref<8x3xf32, #tpu.memory_space<vmem>>, vector<8x3xf32>,
    return
  }
  func.func @transform_0(%arg0: i32) -> (i32, i32) {
    %c0_i32 = arith.constant 0 : i32
    %c0_i32_0 = arith.constant 0 : i32
    return %arg0, %c0_i32 : i32, i32
  }
  func.func @transform_1(%arg0: i32) -> (i32, i32) {
    %c0_i32 = arith.constant 0 : i32
    %c0_i32_0 = arith.constant 0 : i32
    %c0_i32_1 = arith.constant 0 : i32
    return %c0_i32, %c0_i32_0 : i32, i32
  }
  func.func @transform_2(%arg0: i32) -> (i32, i32) {
    %c0_i32 = arith.constant 0 : i32
    %c0_i32_0 = arith.constant 0 : i32
    %c0_i32_1 = arith.constant 0 : i32
    return %c0_i32, %c0_i32_0 : i32, i32
  }
  func.func @transform_3(%arg0: i32) -> (i32, i32) {
    %c0_i32 = arith.constant 0 : i32
    %c0_i32_0 = arith.constant 0 : i32
    %c0_i32_1 = arith.constant 0 : i32
    return %c0_i32, %c0_i32_0 : i32, i32
  }
  func.func @transform_4(%arg0: i32) -> (i32, i32) {
    %c0_i32 = arith.constant 0 : i32
    %c0_i32_0 = arith.constant 0 : i32
    %c0_i32_1 = arith.constant 0 : i32
    return %c0_i32, %c0_i32_0 : i32, i32
  }
  func.func @transform_5(%arg0: i32) -> (i32, i32) {
    %c0_i32 = arith.constant 0 : i32
    %c0_i32_0 = arith.constant 0 : i32
    return %arg0, %c0_i32 : i32, i32
  }
  func.func @transform_6(%arg0: i32) -> (i32, i32) {
    %c0_i32 = arith.constant 0 : i32
    %c0_i32_0 = arith.constant 0 : i32
    return %arg0, %c0_i32 : i32, i32
  }
}

</mosaic_0001>

<llo_original>
// kernel: tpu_custom_call.1
$region0: #{tpu_custom_call.1}
  #allocation0 [shape = 'u32[]', space=smem, size = 0x4, offset = 0x4, fixed_abs, tag = 'smem constant byte address 0x4 - core index']
  #allocation1 [shape = 'u32[144,128]{1,0:T(1,128)}', space=vmem, size = 0x12000, scoped, tag = 'internal scratch']
  %s0 = inlined_call_operand.vmem [shape: f32[8,16], index: 0, kind: input, shape index: {}]
  %s1 = inlined_call_operand.vmem [shape: f32[16,20], index: 1, kind: input, shape index: {}]
  %s2 = inlined_call_operand.vmem [shape: f32[1,20], index: 2, kind: input, shape index: {}]
  %s3 = inlined_call_operand.vmem [shape: f32[20,3], index: 3, kind: input, shape index: {}]
  %s4 = inlined_call_operand.vmem [shape: f32[1,3], index: 4, kind: input, shape index: {}]
  %s5 = inlined_call_operand.hbm [shape: f32[8,20], index: 5, kind: output, shape index: {0}]
  %s6 = inlined_call_operand.vmem [shape: f32[8,3], index: 6, kind: output, shape index: {1}]
  %7 = xla_tuple %s5, %s6
  %s8 = sld [smem:[#allocation0]]
  $region38: #{tpu_custom_call.1} parent=0
    _
  %s10 = ssub.s32 1, %s8
  %s11 = scalar_select 0, %s10, %s8
  $region1: #{tpu_custom_call.1} parent=0
    #allocation2 [shape = 'u8[4096]{0}', space=vmem, size = 0x1000, scoped, tag = 'output window, operand 0, single buffered']
    #allocation3 [shape = 's32[1]{0}', space=sflag, size = 0x4, scoped, tag = 'scoped memory for tpu_custom_call.1']
    %12 = vsyncpa [#allocation3], 0
    // Predicated region
    $region2: #{tpu_custom_call.1} parent=1 // pred_check
      _
    $region3: #{tpu_custom_call.1} parent=1 // pred_check_branch
      %14 = sbr.rel (0) target = $region5
    $region4: #{tpu_custom_call.1} parent=1 // pred_region
      _
    $region5: #{tpu_custom_call.1} parent=1 // pred_fallthru
      _
    // Predicated region
    $region6: #{tpu_custom_call.1} parent=1 // pred_check
      _
    $region7: #{tpu_custom_call.1} parent=1 // pred_check_branch
      %16 = sbr.rel (0) target = $region9
    $region8: #{tpu_custom_call.1} parent=1 // pred_region
      _
    $region9: #{tpu_custom_call.1} parent=1 // pred_fallthru
      _
    // Predicated region
    $region10: #{tpu_custom_call.1} parent=1 // pred_check
      _
    $region11: #{tpu_custom_call.1} parent=1 // pred_check_branch
      %18 = sbr.rel (0) target = $region13
    $region12: #{tpu_custom_call.1} parent=1 // pred_region
      _
    $region13: #{tpu_custom_call.1} parent=1 // pred_fallthru
      _
    // Predicated region
    $region14: #{tpu_custom_call.1} parent=1 // pred_check
      _
    $region15: #{tpu_custom_call.1} parent=1 // pred_check_branch
      %20 = sbr.rel (0) target = $region17
    $region16: #{tpu_custom_call.1} parent=1 // pred_region
      _
    $region17: #{tpu_custom_call.1} parent=1 // pred_fallthru
      _
    // Predicated region
    $region18: #{tpu_custom_call.1} parent=1 // pred_check
      _
    $region19: #{tpu_custom_call.1} parent=1 // pred_check_branch
      %22 = sbr.rel (0) target = $region21
    $region20: #{tpu_custom_call.1} parent=1 // pred_region
      _
    $region21: #{tpu_custom_call.1} parent=1 // pred_fallthru
      _
    %v23 = vld [vmem:[%s0] sm:$0xff]
    %v24 = vld [vmem:[%s1] sm:$0xff]
    %v25 = vld [vmem:[%s1 + $0x8] sm:$0xff]
    %v26 = vld [vmem:[%s2] sm:$0x1]
    %v28 = vlaneseq
    %v29 = vshrl.u32 %v28, 7
    %v30 = vsub.s32 0, %v29
    %v31 = vrot.slane %v26, %v30
    %vm33 = vcmask 130048
    %v35 = vsel %vm33, %v23, 0
    %37 = vmatprep.subr.mxu0 0.0
    %v38 = vand.u32 %v24, 4294901760
    %39 = vmatpush1.msra.mxu0 %v38
    %40 = vmatprep.subr.mxu0 0.0
    %v41 = vand.u32 %v25, 4294901760
    %42 = vmatpush1.msra.mxu0 %v41
    %43 = vmatprep.subr.mxu0 0.0
    %44 = vmatpush1.msra.mxu0 0.0
    %45 = vmatprep.subr.mxu0 0.0
    %46 = vmatpush1.msra.mxu0 0.0
    %47 = vmatprep.subr.mxu0 0.0
    %48 = vmatpush1.msra.mxu0 0.0
    %49 = vmatprep.subr.mxu0 0.0
    %50 = vmatpush1.msra.mxu0 0.0
    %51 = vmatprep.subr.mxu0 0.0
    %52 = vmatpush1.msra.mxu0 0.0
    %53 = vmatprep.subr.mxu0 0.0
    %54 = vmatpush1.msra.mxu0 0.0
    %55 = vmatprep.subr.mxu0 0.0
    %56 = vmatpush1.msra.mxu0 0.0
    %57 = vmatprep.subr.mxu0 0.0
    %58 = vmatpush1.msra.mxu0 0.0
    %59 = vmatprep.subr.mxu0 0.0
    %60 = vmatpush1.msra.mxu0 0.0
    %61 = vmatprep.subr.mxu0 0.0
    %62 = vmatpush1.msra.mxu0 0.0
    %63 = vmatprep.subr.mxu0 0.0
    %64 = vmatpush1.msra.mxu0 0.0
    %65 = vmatprep.subr.mxu0 0.0
    %66 = vmatpush1.msra.mxu0 0.0
    %67 = vmatprep.subr.mxu0 0.0
    %68 = vmatpush1.msra.mxu0 0.0
    %69 = vmatprep.subr.mxu0 0.0
    %70 = vmatpush1.msra.mxu0 0.0
    %71 = vmatprep.subr.mxu0 0.0
    %72 = vmatpush1.msra.mxu0 0.0
    %73 = vmatprep.subr.mxu0 0.0
    %74 = vmatpush1.msra.mxu0 0.0
    %75 = vmatprep.subr.mxu0 0.0
    %76 = vmatpush1.msra.mxu0 0.0
    %77 = vmatprep.subr.mxu0 0.0
    %78 = vmatpush1.msra.mxu0 0.0
    %79 = vmatprep.subr.mxu0 0.0
    %80 = vmatpush1.msra.mxu0 0.0
    %81 = vmatprep.subr.mxu0 0.0
    %82 = vmatpush1.msra.mxu0 0.0
    %83 = vmatprep.subr.mxu0 0.0
    %84 = vmatpush1.msra.mxu0 0.0
    %85 = vmatprep.subr.mxu0 0.0
    %86 = vmatpush1.msra.mxu0 0.0
    %87 = vmatprep.subr.mxu0 0.0
    %88 = vmatpush1.msra.mxu0 0.0
    %89 = vmatprep.subr.mxu0 0.0
    %90 = vmatpush1.msra.mxu0 0.0
    %91 = vmatprep.subr.mxu0 0.0
    %92 = vmatpush1.msra.mxu0 0.0
    %93 = vmatprep.subr.mxu0 0.0
    %94 = vmatpush1.msra.mxu0 0.0
    %95 = vmatprep.subr.mxu0 0.0
    %96 = vmatpush1.msra.mxu0 0.0
    %97 = vmatprep.subr.mxu0 0.0
    %98 = vmatpush1.msra.mxu0 0.0
    %99 = vmatprep.subr.mxu0 0.0
    %100 = vmatpush1.msra.mxu0 0.0
    %101 = vmatprep.subr.mxu0 0.0
    %102 = vmatpush1.msra.mxu0 0.0
    %103 = vmatprep.mubr.f32.mxu0 0.0
    %v104 = vand.u32 %v35, 4294901760
    %v105 = vsub.f32 %v35, %v104
    %v106 = vand.u32 %v105, 4294901760
    %v107 = vsub.f32 %v105, %v106
    %v108 = vand.u32 %v107, 4294901760
    %109 = vmatmul.mubr.f32.gmra.mrb[0].mxu0 %v108
    %v110 = vpop.f32.mrb[0].mxu0
    %v111 = vadd.f32 %v31, %v110
    %v112 = vpop.f32.mrb[0].mxu0
    %113 = vdwg.mxu0
    %114 = vmatprep.subr.mxu0 0.0
    %v115 = vand.u32 %v24, 4294901760
    %v116 = vsub.f32 %v24, %v115
    %v117 = vand.u32 %v116, 4294901760
    %v118 = vsub.f32 %v116, %v117
    %v119 = vand.u32 %v118, 4294901760
    %120 = vmatpush1.msra.mxu0 %v119
    %121 = vmatprep.subr.mxu0 0.0
    %v122 = vand.u32 %v25, 4294901760
    %v123 = vsub.f32 %v25, %v122
    %v124 = vand.u32 %v123, 4294901760
    %v125 = vsub.f32 %v123, %v124
    %v126 = vand.u32 %v125, 4294901760
    %127 = vmatpush1.msra.mxu0 %v126
    %128 = vmatprep.subr.mxu0 0.0
    %129 = vmatpush1.msra.mxu0 0.0
    %130 = vmatprep.subr.mxu0 0.0
    %131 = vmatpush1.msra.mxu0 0.0
    %132 = vmatprep.subr.mxu0 0.0
    %133 = vmatpush1.msra.mxu0 0.0
    %134 = vmatprep.subr.mxu0 0.0
    %135 = vmatpush1.msra.mxu0 0.0
    %136 = vmatprep.subr.mxu0 0.0
    %137 = vmatpush1.msra.mxu0 0.0
    %138 = vmatprep.subr.mxu0 0.0
    %139 = vmatpush1.msra.mxu0 0.0
    %140 = vmatprep.subr.mxu0 0.0
    %141 = vmatpush1.msra.mxu0 0.0
    %142 = vmatprep.subr.mxu0 0.0
    %143 = vmatpush1.msra.mxu0 0.0
    %144 = vmatprep.subr.mxu0 0.0
    %145 = vmatpush1.msra.mxu0 0.0
    %146 = vmatprep.subr.mxu0 0.0
    %147 = vmatpush1.msra.mxu0 0.0
    %148 = vmatprep.subr.mxu0 0.0
    %149 = vmatpush1.msra.mxu0 0.0
    %150 = vmatprep.subr.mxu0 0.0
    %151 = vmatpush1.msra.mxu0 0.0
    %152 = vmatprep.subr.mxu0 0.0
    %153 = vmatpush1.msra.mxu0 0.0
    %154 = vmatprep.subr.mxu0 0.0
    %155 = vmatpush1.msra.mxu0 0.0
    %156 = vmatprep.subr.mxu0 0.0
    %157 = vmatpush1.msra.mxu0 0.0
    %158 = vmatprep.subr.mxu0 0.0
    %159 = vmatpush1.msra.mxu0 0.0
    %160 = vmatprep.subr.mxu0 0.0
    %161 = vmatpush1.msra.mxu0 0.0
    %162 = vmatprep.subr.mxu0 0.0
    %163 = vmatpush1.msra.mxu0 0.0
    %164 = vmatprep.subr.mxu0 0.0
    %165 = vmatpush1.msra.mxu0 0.0
    %166 = vmatprep.subr.mxu0 0.0
    %167 = vmatpush1.msra.mxu0 0.0
    %168 = vmatprep.subr.mxu0 0.0
    %169 = vmatpush1.msra.mxu0 0.0
    %170 = vmatprep.subr.mxu0 0.0
    %171 = vmatpush1.msra.mxu0 0.0
    %172 = vmatprep.subr.mxu0 0.0
    %173 = vmatpush1.msra.mxu0 0.0
    %174 = vmatprep.subr.mxu0 0.0
    %175 = vmatpush1.msra.mxu0 0.0
    %176 = vmatprep.subr.mxu0 0.0
    %177 = vmatpush1.msra.mxu0 0.0
    %178 = vmatprep.subr.mxu0 0.0
    %179 = vmatpush1.msra.mxu0 0.0
    %180 = vmatprep.subr.mxu0 0.0
    %181 = vmatpush1.msra.mxu0 0.0
    %182 = vmatprep.subr.mxu0 0.0
    %183 = vmatpush1.msra.mxu0 0.0
    %184 = vmatprep.subr.mxu0 0.0
    %185 = vmatpush1.msra.mxu0 0.0
    %186 = vmatprep.subr.mxu0 0.0
    %187 = vmatpush1.msra.mxu0 0.0
    %188 = vmatprep.mubr.f32.mxu0 0.0
    %v189 = vand.u32 %v35, 4294901760
    %190 = vmatmul.mubr.f32.gmra.mrb[0].mxu0 %v189
    %v191 = vpop.f32.mrb[0].mxu0
    %v192 = vadd.f32 %v111, %v191
    %v193 = vpop.f32.mrb[0].mxu0
    %194 = vdwg.mxu0
    %195 = vmatprep.subr.mxu0 0.0
    %v196 = vand.u32 %v24, 4294901760
    %v197 = vsub.f32 %v24, %v196
    %198 = vmatpush1.msra.mxu0 %v197
    %199 = vmatprep.subr.mxu0 0.0
    %v200 = vand.u32 %v25, 4294901760
    %v201 = vsub.f32 %v25, %v200
    %202 = vmatpush1.msra.mxu0 %v201
    %203 = vmatprep.subr.mxu0 0.0
    %204 = vmatpush1.msra.mxu0 0.0
    %205 = vmatprep.subr.mxu0 0.0
    %206 = vmatpush1.msra.mxu0 0.0
    %207 = vmatprep.subr.mxu0 0.0
    %208 = vmatpush1.msra.mxu0 0.0
    %209 = vmatprep.subr.mxu0 0.0
    %210 = vmatpush1.msra.mxu0 0.0
    %211 = vmatprep.subr.mxu0 0.0
    %212 = vmatpush1.msra.mxu0 0.0
    %213 = vmatprep.subr.mxu0 0.0
    %214 = vmatpush1.msra.mxu0 0.0
    %215 = vmatprep.subr.mxu0 0.0
    %216 = vmatpush1.msra.mxu0 0.0
    %217 = vmatprep.subr.mxu0 0.0
    %218 = vmatpush1.msra.mxu0 0.0
    %219 = vmatprep.subr.mxu0 0.0
    %220 = vmatpush1.msra.mxu0 0.0
    %221 = vmatprep.subr.mxu0 0.0
    %222 = vmatpush1.msra.mxu0 0.0
    %223 = vmatprep.subr.mxu0 0.0
    %224 = vmatpush1.msra.mxu0 0.0
    %225 = vmatprep.subr.mxu0 0.0
    %226 = vmatpush1.msra.mxu0 0.0
    %227 = vmatprep.subr.mxu0 0.0
    %228 = vmatpush1.msra.mxu0 0.0
    %229 = vmatprep.subr.mxu0 0.0
    %230 = vmatpush1.msra.mxu0 0.0
    %231 = vmatprep.subr.mxu0 0.0
    %232 = vmatpush1.msra.mxu0 0.0
    %233 = vmatprep.subr.mxu0 0.0
    %234 = vmatpush1.msra.mxu0 0.0
    %235 = vmatprep.subr.mxu0 0.0
    %236 = vmatpush1.msra.mxu0 0.0
    %237 = vmatprep.subr.mxu0 0.0
    %238 = vmatpush1.msra.mxu0 0.0
    %239 = vmatprep.subr.mxu0 0.0
    %240 = vmatpush1.msra.mxu0 0.0
    %241 = vmatprep.subr.mxu0 0.0
    %242 = vmatpush1.msra.mxu0 0.0
    %243 = vmatprep.subr.mxu0 0.0
    %244 = vmatpush1.msra.mxu0 0.0
    %245 = vmatprep.subr.mxu0 0.0
    %246 = vmatpush1.msra.mxu0 0.0
    %247 = vmatprep.subr.mxu0 0.0
    %248 = vmatpush1.msra.mxu0 0.0
    %249 = vmatprep.subr.mxu0 0.0
    %250 = vmatpush1.msra.mxu0 0.0
    %251 = vmatprep.subr.mxu0 0.0
    %252 = vmatpush1.msra.mxu0 0.0
    %253 = vmatprep.subr.mxu0 0.0
    %254 = vmatpush1.msra.mxu0 0.0
    %255 = vmatprep.subr.mxu0 0.0
    %256 = vmatpush1.msra.mxu0 0.0
    %257 = vmatprep.subr.mxu0 0.0
    %258 = vmatpush1.msra.mxu0 0.0
    %259 = vmatprep.subr.mxu0 0.0
    %260 = vmatpush1.msra.mxu0 0.0
    %261 = vmatprep.subr.mxu0 0.0
    %262 = vmatpush1.msra.mxu0 0.0
    %263 = vmatprep.mubr.f32.mxu0 0.0
    %v264 = vand.u32 %v35, 4294901760
    %v265 = vsub.f32 %v35, %v264
    %266 = vmatmul.mubr.f32.gmra.mrb[0].mxu0 %v265
    %v267 = vpop.f32.mrb[0].mxu0
    %v268 = vadd.f32 %v192, %v267
    %v269 = vpop.f32.mrb[0].mxu0
    %270 = vdwg.mxu0
    %271 = vmatprep.subr.mxu0 0.0
    %v272 = vand.u32 %v24, 4294901760
    %273 = vmatpush1.msra.mxu0 %v272
    %274 = vmatprep.subr.mxu0 0.0
    %v275 = vand.u32 %v25, 4294901760
    %276 = vmatpush1.msra.mxu0 %v275
    %277 = vmatprep.subr.mxu0 0.0
    %278 = vmatpush1.msra.mxu0 0.0
    %279 = vmatprep.subr.mxu0 0.0
    %280 = vmatpush1.msra.mxu0 0.0
    %281 = vmatprep.subr.mxu0 0.0
    %282 = vmatpush1.msra.mxu0 0.0
    %283 = vmatprep.subr.mxu0 0.0
    %284 = vmatpush1.msra.mxu0 0.0
    %285 = vmatprep.subr.mxu0 0.0
    %286 = vmatpush1.msra.mxu0 0.0
    %287 = vmatprep.subr.mxu0 0.0
    %288 = vmatpush1.msra.mxu0 0.0
    %289 = vmatprep.subr.mxu0 0.0
    %290 = vmatpush1.msra.mxu0 0.0
    %291 = vmatprep.subr.mxu0 0.0
    %292 = vmatpush1.msra.mxu0 0.0
    %293 = vmatprep.subr.mxu0 0.0
    %294 = vmatpush1.msra.mxu0 0.0
    %295 = vmatprep.subr.mxu0 0.0
    %296 = vmatpush1.msra.mxu0 0.0
    %297 = vmatprep.subr.mxu0 0.0
    %298 = vmatpush1.msra.mxu0 0.0
    %299 = vmatprep.subr.mxu0 0.0
    %300 = vmatpush1.msra.mxu0 0.0
    %301 = vmatprep.subr.mxu0 0.0
    %302 = vmatpush1.msra.mxu0 0.0
    %303 = vmatprep.subr.mxu0 0.0
    %304 = vmatpush1.msra.mxu0 0.0
    %305 = vmatprep.subr.mxu0 0.0
    %306 = vmatpush1.msra.mxu0 0.0
    %307 = vmatprep.subr.mxu0 0.0
    %308 = vmatpush1.msra.mxu0 0.0
    %309 = vmatprep.subr.mxu0 0.0
    %310 = vmatpush1.msra.mxu0 0.0
    %311 = vmatprep.subr.mxu0 0.0
    %312 = vmatpush1.msra.mxu0 0.0
    %313 = vmatprep.subr.mxu0 0.0
    %314 = vmatpush1.msra.mxu0 0.0
    %315 = vmatprep.subr.mxu0 0.0
    %316 = vmatpush1.msra.mxu0 0.0
    %317 = vmatprep.subr.mxu0 0.0
    %318 = vmatpush1.msra.mxu0 0.0
    %319 = vmatprep.subr.mxu0 0.0
    %320 = vmatpush1.msra.mxu0 0.0
    %321 = vmatprep.subr.mxu0 0.0
    %322 = vmatpush1.msra.mxu0 0.0
    %323 = vmatprep.subr.mxu0 0.0
    %324 = vmatpush1.msra.mxu0 0.0
    %325 = vmatprep.subr.mxu0 0.0
    %326 = vmatpush1.msra.mxu0 0.0
    %327 = vmatprep.subr.mxu0 0.0
    %328 = vmatpush1.msra.mxu0 0.0
    %329 = vmatprep.subr.mxu0 0.0
    %330 = vmatpush1.msra.mxu0 0.0
    %331 = vmatprep.subr.mxu0 0.0
    %332 = vmatpush1.msra.mxu0 0.0
    %333 = vmatprep.subr.mxu0 0.0
    %334 = vmatpush1.msra.mxu0 0.0
    %335 = vmatprep.subr.mxu0 0.0
    %336 = vmatpush1.msra.mxu0 0.0
    %337 = vmatprep.mubr.f32.mxu0 0.0
    %v338 = vand.u32 %v35, 4294901760
    %v339 = vsub.f32 %v35, %v338
    %v340 = vand.u32 %v339, 4294901760
    %341 = vmatmul.mubr.f32.gmra.mrb[0].mxu0 %v340
    %v342 = vpop.f32.mrb[0].mxu0
    %v343 = vadd.f32 %v268, %v342
    %v344 = vpop.f32.mrb[0].mxu0
    %345 = vdwg.mxu0
    %346 = vmatprep.subr.mxu0 0.0
    %v347 = vand.u32 %v24, 4294901760
    %v348 = vsub.f32 %v24, %v347
    %v349 = vand.u32 %v348, 4294901760
    %350 = vmatpush1.msra.mxu0 %v349
    %351 = vmatprep.subr.mxu0 0.0
    %v352 = vand.u32 %v25, 4294901760
    %v353 = vsub.f32 %v25, %v352
    %v354 = vand.u32 %v353, 4294901760
    %355 = vmatpush1.msra.mxu0 %v354
    %356 = vmatprep.subr.mxu0 0.0
    %357 = vmatpush1.msra.mxu0 0.0
    %358 = vmatprep.subr.mxu0 0.0
    %359 = vmatpush1.msra.mxu0 0.0
    %360 = vmatprep.subr.mxu0 0.0
    %361 = vmatpush1.msra.mxu0 0.0
    %362 = vmatprep.subr.mxu0 0.0
    %363 = vmatpush1.msra.mxu0 0.0
    %364 = vmatprep.subr.mxu0 0.0
    %365 = vmatpush1.msra.mxu0 0.0
    %366 = vmatprep.subr.mxu0 0.0
    %367 = vmatpush1.msra.mxu0 0.0
    %368 = vmatprep.subr.mxu0 0.0
    %369 = vmatpush1.msra.mxu0 0.0
    %370 = vmatprep.subr.mxu0 0.0
    %371 = vmatpush1.msra.mxu0 0.0
    %372 = vmatprep.subr.mxu0 0.0
    %373 = vmatpush1.msra.mxu0 0.0
    %374 = vmatprep.subr.mxu0 0.0
    %375 = vmatpush1.msra.mxu0 0.0
    %376 = vmatprep.subr.mxu0 0.0
    %377 = vmatpush1.msra.mxu0 0.0
    %378 = vmatprep.subr.mxu0 0.0
    %379 = vmatpush1.msra.mxu0 0.0
    %380 = vmatprep.subr.mxu0 0.0
    %381 = vmatpush1.msra.mxu0 0.0
    %382 = vmatprep.subr.mxu0 0.0
    %383 = vmatpush1.msra.mxu0 0.0
    %384 = vmatprep.subr.mxu0 0.0
    %385 = vmatpush1.msra.mxu0 0.0
    %386 = vmatprep.subr.mxu0 0.0
    %387 = vmatpush1.msra.mxu0 0.0
    %388 = vmatprep.subr.mxu0 0.0
    %389 = vmatpush1.msra.mxu0 0.0
    %390 = vmatprep.subr.mxu0 0.0
    %391 = vmatpush1.msra.mxu0 0.0
    %392 = vmatprep.subr.mxu0 0.0
    %393 = vmatpush1.msra.mxu0 0.0
    %394 = vmatprep.subr.mxu0 0.0
    %395 = vmatpush1.msra.mxu0 0.0
    %396 = vmatprep.subr.mxu0 0.0
    %397 = vmatpush1.msra.mxu0 0.0
    %398 = vmatprep.subr.mxu0 0.0
    %399 = vmatpush1.msra.mxu0 0.0
    %400 = vmatprep.subr.mxu0 0.0
    %401 = vmatpush1.msra.mxu0 0.0
    %402 = vmatprep.subr.mxu0 0.0
    %403 = vmatpush1.msra.mxu0 0.0
    %404 = vmatprep.subr.mxu0 0.0
    %405 = vmatpush1.msra.mxu0 0.0
    %406 = vmatprep.subr.mxu0 0.0
    %407 = vmatpush1.msra.mxu0 0.0
    %408 = vmatprep.subr.mxu0 0.0
    %409 = vmatpush1.msra.mxu0 0.0
    %410 = vmatprep.subr.mxu0 0.0
    %411 = vmatpush1.msra.mxu0 0.0
    %412 = vmatprep.subr.mxu0 0.0
    %413 = vmatpush1.msra.mxu0 0.0
    %414 = vmatprep.subr.mxu0 0.0
    %415 = vmatpush1.msra.mxu0 0.0
    %416 = vmatprep.mubr.f32.mxu0 0.0
    %v417 = vand.u32 %v35, 4294901760
    %418 = vmatmul.mubr.f32.gmra.mrb[0].mxu0 %v417
    %v419 = vpop.f32.mrb[0].mxu0
    %v420 = vadd.f32 %v343, %v419
    %v421 = vpop.f32.mrb[0].mxu0
    %422 = vdwg.mxu0
    %423 = vmatprep.subr.mxu0 0.0
    %v424 = vand.u32 %v24, 4294901760
    %425 = vmatpush1.msra.mxu0 %v424
    %426 = vmatprep.subr.mxu0 0.0
    %v427 = vand.u32 %v25, 4294901760
    %428 = vmatpush1.msra.mxu0 %v427
    %429 = vmatprep.subr.mxu0 0.0
    %430 = vmatpush1.msra.mxu0 0.0
    %431 = vmatprep.subr.mxu0 0.0
    %432 = vmatpush1.msra.mxu0 0.0
    %433 = vmatprep.subr.mxu0 0.0
    %434 = vmatpush1.msra.mxu0 0.0
    %435 = vmatprep.subr.mxu0 0.0
    %436 = vmatpush1.msra.mxu0 0.0
    %437 = vmatprep.subr.mxu0 0.0
    %438 = vmatpush1.msra.mxu0 0.0
    %439 = vmatprep.subr.mxu0 0.0
    %440 = vmatpush1.msra.mxu0 0.0
    %441 = vmatprep.subr.mxu0 0.0
    %442 = vmatpush1.msra.mxu0 0.0
    %443 = vmatprep.subr.mxu0 0.0
    %444 = vmatpush1.msra.mxu0 0.0
    %445 = vmatprep.subr.mxu0 0.0
    %446 = vmatpush1.msra.mxu0 0.0
    %447 = vmatprep.subr.mxu0 0.0
    %448 = vmatpush1.msra.mxu0 0.0
    %449 = vmatprep.subr.mxu0 0.0
    %450 = vmatpush1.msra.mxu0 0.0
    %451 = vmatprep.subr.mxu0 0.0
    %452 = vmatpush1.msra.mxu0 0.0
    %453 = vmatprep.subr.mxu0 0.0
    %454 = vmatpush1.msra.mxu0 0.0
    %455 = vmatprep.subr.mxu0 0.0
    %456 = vmatpush1.msra.mxu0 0.0
    %457 = vmatprep.subr.mxu0 0.0
    %458 = vmatpush1.msra.mxu0 0.0
    %459 = vmatprep.subr.mxu0 0.0
    %460 = vmatpush1.msra.mxu0 0.0
    %461 = vmatprep.subr.mxu0 0.0
    %462 = vmatpush1.msra.mxu0 0.0
    %463 = vmatprep.subr.mxu0 0.0
    %464 = vmatpush1.msra.mxu0 0.0
    %465 = vmatprep.subr.mxu0 0.0
    %466 = vmatpush1.msra.mxu0 0.0
    %467 = vmatprep.subr.mxu0 0.0
    %468 = vmatpush1.msra.mxu0 0.0
    %469 = vmatprep.subr.mxu0 0.0
    %470 = vmatpush1.msra.mxu0 0.0
    %471 = vmatprep.subr.mxu0 0.0
    %472 = vmatpush1.msra.mxu0 0.0
    %473 = vmatprep.subr.mxu0 0.0
    %474 = vmatpush1.msra.mxu0 0.0
    %475 = vmatprep.subr.mxu0 0.0
    %476 = vmatpush1.msra.mxu0 0.0
    %477 = vmatprep.subr.mxu0 0.0
    %478 = vmatpush1.msra.mxu0 0.0
    %479 = vmatprep.subr.mxu0 0.0
    %480 = vmatpush1.msra.mxu0 0.0
    %481 = vmatprep.subr.mxu0 0.0
    %482 = vmatpush1.msra.mxu0 0.0
    %483 = vmatprep.subr.mxu0 0.0
    %484 = vmatpush1.msra.mxu0 0.0
    %485 = vmatprep.subr.mxu0 0.0
    %486 = vmatpush1.msra.mxu0 0.0
    %487 = vmatprep.subr.mxu0 0.0
    %488 = vmatpush1.msra.mxu0 0.0
    %489 = vmatprep.mubr.f32.mxu0 0.0
    %v490 = vand.u32 %v35, 4294901760
    %491 = vmatmul.mubr.f32.gmra.mrb[0].mxu0 %v490
    %v492 = vpop.f32.mrb[0].mxu0
    %v493 = vadd.f32 %v420, %v492
    %v494 = vpop.f32.mrb[0].mxu0
    %495 = vdwg.mxu0
    %v496 = vmax.f32 %v493, 0.0
    %vm497 = vcmask 162816
    %498 = vst.msk [vmem:[#allocation2] sm:$0xff] %vm497, %v496
    %v499 = vld [vmem:[%s3] sm:$0xff]
    %v500 = vld [vmem:[%s3 + $0x8] sm:$0xff]
    %v501 = vld [vmem:[%s3 + $0x10] sm:$0xf]
    %v502 = vld [vmem:[%s4] sm:$0x1]
    %v504 = vlaneseq
    %v505 = vshrl.u32 %v504, 7
    %v506 = vsub.s32 0, %v505
    %v507 = vrot.slane %v502, %v506
    %v510 = vsel %vm497, %v496, 0
    %vm512 = vcmask 1043456
    %v514 = vsel %vm512, %v501, 0
    %516 = vmatprep.subr.mxu0 0.0
    %v517 = vand.u32 %v499, 4294901760
    %518 = vmatpush1.msra.mxu0 %v517
    %519 = vmatprep.subr.mxu0 0.0
    %v520 = vand.u32 %v500, 4294901760
    %521 = vmatpush1.msra.mxu0 %v520
    %522 = vmatprep.subr.mxu0 0.0
    %v523 = vand.u32 %v514, 4294901760
    %524 = vmatpush1.msra.mxu0 %v523
    %525 = vmatprep.subr.mxu0 0.0
    %526 = vmatpush1.msra.mxu0 0.0
    %527 = vmatprep.subr.mxu0 0.0
    %528 = vmatpush1.msra.mxu0 0.0
    %529 = vmatprep.subr.mxu0 0.0
    %530 = vmatpush1.msra.mxu0 0.0
    %531 = vmatprep.subr.mxu0 0.0
    %532 = vmatpush1.msra.mxu0 0.0
    %533 = vmatprep.subr.mxu0 0.0
    %534 = vmatpush1.msra.mxu0 0.0
    %535 = vmatprep.subr.mxu0 0.0
    %536 = vmatpush1.msra.mxu0 0.0
    %537 = vmatprep.subr.mxu0 0.0
    %538 = vmatpush1.msra.mxu0 0.0
    %539 = vmatprep.subr.mxu0 0.0
    %540 = vmatpush1.msra.mxu0 0.0
    %541 = vmatprep.subr.mxu0 0.0
    %542 = vmatpush1.msra.mxu0 0.0
    %543 = vmatprep.subr.mxu0 0.0
    %544 = vmatpush1.msra.mxu0 0.0
    %545 = vmatprep.subr.mxu0 0.0
    %546 = vmatpush1.msra.mxu0 0.0
    %547 = vmatprep.subr.mxu0 0.0
    %548 = vmatpush1.msra.mxu0 0.0
    %549 = vmatprep.subr.mxu0 0.0
    %550 = vmatpush1.msra.mxu0 0.0
    %551 = vmatprep.subr.mxu0 0.0
    %552 = vmatpush1.msra.mxu0 0.0
    %553 = vmatprep.subr.mxu0 0.0
    %554 = vmatpush1.msra.mxu0 0.0
    %555 = vmatprep.subr.mxu0 0.0
    %556 = vmatpush1.msra.mxu0 0.0
    %557 = vmatprep.subr.mxu0 0.0
    %558 = vmatpush1.msra.mxu0 0.0
    %559 = vmatprep.subr.mxu0 0.0
    %560 = vmatpush1.msra.mxu0 0.0
    %561 = vmatprep.subr.mxu0 0.0
    %562 = vmatpush1.msra.mxu0 0.0
    %563 = vmatprep.subr.mxu0 0.0
    %564 = vmatpush1.msra.mxu0 0.0
    %565 = vmatprep.subr.mxu0 0.0
    %566 = vmatpush1.msra.mxu0 0.0
    %567 = vmatprep.subr.mxu0 0.0
    %568 = vmatpush1.msra.mxu0 0.0
    %569 = vmatprep.subr.mxu0 0.0
    %570 = vmatpush1.msra.mxu0 0.0
    %571 = vmatprep.subr.mxu0 0.0
    %572 = vmatpush1.msra.mxu0 0.0
    %573 = vmatprep.subr.mxu0 0.0
    %574 = vmatpush1.msra.mxu0 0.0
    %575 = vmatprep.subr.mxu0 0.0
    %576 = vmatpush1.msra.mxu0 0.0
    %577 = vmatprep.subr.mxu0 0.0
    %578 = vmatpush1.msra.mxu0 0.0
    %579 = vmatprep.subr.mxu0 0.0
    %580 = vmatpush1.msra.mxu0 0.0
    %581 = vmatprep.subr.mxu0 0.0
    %582 = vmatpush1.msra.mxu0 0.0
    %583 = vmatprep.mubr.f32.mxu0 0.0
    %v584 = vand.u32 %v510, 4294901760
    %v585 = vsub.f32 %v510, %v584
    %v586 = vand.u32 %v585, 4294901760
    %v587 = vsub.f32 %v585, %v586
    %v588 = vand.u32 %v587, 4294901760
    %589 = vmatmul.mubr.f32.gmra.mrb[0].mxu0 %v588
    %v590 = vpop.f32.mrb[0].mxu0
    %v591 = vadd.f32 %v507, %v590
    %v592 = vpop.f32.mrb[0].mxu0
    %593 = vdwg.mxu0
    %594 = vmatprep.subr.mxu0 0.0
    %v595 = vand.u32 %v499, 4294901760
    %v596 = vsub.f32 %v499, %v595
    %v597 = vand.u32 %v596, 4294901760
    %v598 = vsub.f32 %v596, %v597
    %v599 = vand.u32 %v598, 4294901760
    %600 = vmatpush1.msra.mxu0 %v599
    %601 = vmatprep.subr.mxu0 0.0
    %v602 = vand.u32 %v500, 4294901760
    %v603 = vsub.f32 %v500, %v602
    %v604 = vand.u32 %v603, 4294901760
    %v605 = vsub.f32 %v603, %v604
    %v606 = vand.u32 %v605, 4294901760
    %607 = vmatpush1.msra.mxu0 %v606
    %608 = vmatprep.subr.mxu0 0.0
    %v609 = vand.u32 %v514, 4294901760
    %v610 = vsub.f32 %v514, %v609
    %v611 = vand.u32 %v610, 4294901760
    %v612 = vsub.f32 %v610, %v611
    %v613 = vand.u32 %v612, 4294901760
    %614 = vmatpush1.msra.mxu0 %v613
    %615 = vmatprep.subr.mxu0 0.0
    %616 = vmatpush1.msra.mxu0 0.0
    %617 = vmatprep.subr.mxu0 0.0
    %618 = vmatpush1.msra.mxu0 0.0
    %619 = vmatprep.subr.mxu0 0.0
    %620 = vmatpush1.msra.mxu0 0.0
    %621 = vmatprep.subr.mxu0 0.0
    %622 = vmatpush1.msra.mxu0 0.0
    %623 = vmatprep.subr.mxu0 0.0
    %624 = vmatpush1.msra.mxu0 0.0
    %625 = vmatprep.subr.mxu0 0.0
    %626 = vmatpush1.msra.mxu0 0.0
    %627 = vmatprep.subr.mxu0 0.0
    %628 = vmatpush1.msra.mxu0 0.0
    %629 = vmatprep.subr.mxu0 0.0
    %630 = vmatpush1.msra.mxu0 0.0
    %631 = vmatprep.subr.mxu0 0.0
    %632 = vmatpush1.msra.mxu0 0.0
    %633 = vmatprep.subr.mxu0 0.0
    %634 = vmatpush1.msra.mxu0 0.0
    %635 = vmatprep.subr.mxu0 0.0
    %636 = vmatpush1.msra.mxu0 0.0
    %637 = vmatprep.subr.mxu0 0.0
    %638 = vmatpush1.msra.mxu0 0.0
    %639 = vmatprep.subr.mxu0 0.0
    %640 = vmatpush1.msra.mxu0 0.0
    %641 = vmatprep.subr.mxu0 0.0
    %642 = vmatpush1.msra.mxu0 0.0
    %643 = vmatprep.subr.mxu0 0.0
    %644 = vmatpush1.msra.mxu0 0.0
    %645 = vmatprep.subr.mxu0 0.0
    %646 = vmatpush1.msra.mxu0 0.0
    %647 = vmatprep.subr.mxu0 0.0
    %648 = vmatpush1.msra.mxu0 0.0
    %649 = vmatprep.subr.mxu0 0.0
    %650 = vmatpush1.msra.mxu0 0.0
    %651 = vmatprep.subr.mxu0 0.0
    %652 = vmatpush1.msra.mxu0 0.0
    %653 = vmatprep.subr.mxu0 0.0
    %654 = vmatpush1.msra.mxu0 0.0
    %655 = vmatprep.subr.mxu0 0.0
    %656 = vmatpush1.msra.mxu0 0.0
    %657 = vmatprep.subr.mxu0 0.0
    %658 = vmatpush1.msra.mxu0 0.0
    %659 = vmatprep.subr.mxu0 0.0
    %660 = vmatpush1.msra.mxu0 0.0
    %661 = vmatprep.subr.mxu0 0.0
    %662 = vmatpush1.msra.mxu0 0.0
    %663 = vmatprep.subr.mxu0 0.0
    %664 = vmatpush1.msra.mxu0 0.0
    %665 = vmatprep.subr.mxu0 0.0
    %666 = vmatpush1.msra.mxu0 0.0
    %667 = vmatprep.subr.mxu0 0.0
    %668 = vmatpush1.msra.mxu0 0.0
    %669 = vmatprep.subr.mxu0 0.0
    %670 = vmatpush1.msra.mxu0 0.0
    %671 = vmatprep.subr.mxu0 0.0
    %672 = vmatpush1.msra.mxu0 0.0
    %673 = vmatprep.mubr.f32.mxu0 0.0
    %v674 = vand.u32 %v510, 4294901760
    %675 = vmatmul.mubr.f32.gmra.mrb[0].mxu0 %v674
    %v676 = vpop.f32.mrb[0].mxu0
    %v677 = vadd.f32 %v591, %v676
    %v678 = vpop.f32.mrb[0].mxu0
    %679 = vdwg.mxu0
    %680 = vmatprep.subr.mxu0 0.0
    %v681 = vand.u32 %v499, 4294901760
    %v682 = vsub.f32 %v499, %v681
    %683 = vmatpush1.msra.mxu0 %v682
    %684 = vmatprep.subr.mxu0 0.0
    %v685 = vand.u32 %v500, 4294901760
    %v686 = vsub.f32 %v500, %v685
    %687 = vmatpush1.msra.mxu0 %v686
    %688 = vmatprep.subr.mxu0 0.0
    %v689 = vand.u32 %v514, 4294901760
    %v690 = vsub.f32 %v514, %v689
    %691 = vmatpush1.msra.mxu0 %v690
    %692 = vmatprep.subr.mxu0 0.0
    %693 = vmatpush1.msra.mxu0 0.0
    %694 = vmatprep.subr.mxu0 0.0
    %695 = vmatpush1.msra.mxu0 0.0
    %696 = vmatprep.subr.mxu0 0.0
    %697 = vmatpush1.msra.mxu0 0.0
    %698 = vmatprep.subr.mxu0 0.0
    %699 = vmatpush1.msra.mxu0 0.0
    %700 = vmatprep.subr.mxu0 0.0
    %701 = vmatpush1.msra.mxu0 0.0
    %702 = vmatprep.subr.mxu0 0.0
    %703 = vmatpush1.msra.mxu0 0.0
    %704 = vmatprep.subr.mxu0 0.0
    %705 = vmatpush1.msra.mxu0 0.0
    %706 = vmatprep.subr.mxu0 0.0
    %707 = vmatpush1.msra.mxu0 0.0
    %708 = vmatprep.subr.mxu0 0.0
    %709 = vmatpush1.msra.mxu0 0.0
    %710 = vmatprep.subr.mxu0 0.0
    %711 = vmatpush1.msra.mxu0 0.0
    %712 = vmatprep.subr.mxu0 0.0
    %713 = vmatpush1.msra.mxu0 0.0
    %714 = vmatprep.subr.mxu0 0.0
    %715 = vmatpush1.msra.mxu0 0.0
    %716 = vmatprep.subr.mxu0 0.0
    %717 = vmatpush1.msra.mxu0 0.0
    %718 = vmatprep.subr.mxu0 0.0
    %719 = vmatpush1.msra.mxu0 0.0
    %720 = vmatprep.subr.mxu0 0.0
    %721 = vmatpush1.msra.mxu0 0.0
    %722 = vmatprep.subr.mxu0 0.0
    %723 = vmatpush1.msra.mxu0 0.0
    %724 = vmatprep.subr.mxu0 0.0
    %725 = vmatpush1.msra.mxu0 0.0
    %726 = vmatprep.subr.mxu0 0.0
    %727 = vmatpush1.msra.mxu0 0.0
    %728 = vmatprep.subr.mxu0 0.0
    %729 = vmatpush1.msra.mxu0 0.0
    %730 = vmatprep.subr.mxu0 0.0
    %731 = vmatpush1.msra.mxu0 0.0
    %732 = vmatprep.subr.mxu0 0.0
    %733 = vmatpush1.msra.mxu0 0.0
    %734 = vmatprep.subr.mxu0 0.0
    %735 = vmatpush1.msra.mxu0 0.0
    %736 = vmatprep.subr.mxu0 0.0
    %737 = vmatpush1.msra.mxu0 0.0
    %738 = vmatprep.subr.mxu0 0.0
    %739 = vmatpush1.msra.mxu0 0.0
    %740 = vmatprep.subr.mxu0 0.0
    %741 = vmatpush1.msra.mxu0 0.0
    %742 = vmatprep.subr.mxu0 0.0
    %743 = vmatpush1.msra.mxu0 0.0
    %744 = vmatprep.subr.mxu0 0.0
    %745 = vmatpush1.msra.mxu0 0.0
    %746 = vmatprep.subr.mxu0 0.0
    %747 = vmatpush1.msra.mxu0 0.0
    %748 = vmatprep.subr.mxu0 0.0
    %749 = vmatpush1.msra.mxu0 0.0
    %750 = vmatprep.mubr.f32.mxu0 0.0
    %v751 = vand.u32 %v510, 4294901760
    %v752 = vsub.f32 %v510, %v751
    %753 = vmatmul.mubr.f32.gmra.mrb[0].mxu0 %v752
    %v754 = vpop.f32.mrb[0].mxu0
    %v755 = vadd.f32 %v677, %v754
    %v756 = vpop.f32.mrb[0].mxu0
    %757 = vdwg.mxu0
    %758 = vmatprep.subr.mxu0 0.0
    %v759 = vand.u32 %v499, 4294901760
    %760 = vmatpush1.msra.mxu0 %v759
    %761 = vmatprep.subr.mxu0 0.0
    %v762 = vand.u32 %v500, 4294901760
    %763 = vmatpush1.msra.mxu0 %v762
    %764 = vmatprep.subr.mxu0 0.0
    %v765 = vand.u32 %v514, 4294901760
    %766 = vmatpush1.msra.mxu0 %v765
    %767 = vmatprep.subr.mxu0 0.0
    %768 = vmatpush1.msra.mxu0 0.0
    %769 = vmatprep.subr.mxu0 0.0
    %770 = vmatpush1.msra.mxu0 0.0
    %771 = vmatprep.subr.mxu0 0.0
    %772 = vmatpush1.msra.mxu0 0.0
    %773 = vmatprep.subr.mxu0 0.0
    %774 = vmatpush1.msra.mxu0 0.0
    %775 = vmatprep.subr.mxu0 0.0
    %776 = vmatpush1.msra.mxu0 0.0
    %777 = vmatprep.subr.mxu0 0.0
    %778 = vmatpush1.msra.mxu0 0.0
    %779 = vmatprep.subr.mxu0 0.0
    %780 = vmatpush1.msra.mxu0 0.0
    %781 = vmatprep.subr.mxu0 0.0
    %782 = vmatpush1.msra.mxu0 0.0
    %783 = vmatprep.subr.mxu0 0.0
    %784 = vmatpush1.msra.mxu0 0.0
    %785 = vmatprep.subr.mxu0 0.0
    %786 = vmatpush1.msra.mxu0 0.0
    %787 = vmatprep.subr.mxu0 0.0
    %788 = vmatpush1.msra.mxu0 0.0
    %789 = vmatprep.subr.mxu0 0.0
    %790 = vmatpush1.msra.mxu0 0.0
    %791 = vmatprep.subr.mxu0 0.0
    %792 = vmatpush1.msra.mxu0 0.0
    %793 = vmatprep.subr.mxu0 0.0
    %794 = vmatpush1.msra.mxu0 0.0
    %795 = vmatprep.subr.mxu0 0.0
    %796 = vmatpush1.msra.mxu0 0.0
    %797 = vmatprep.subr.mxu0 0.0
    %798 = vmatpush1.msra.mxu0 0.0
    %799 = vmatprep.subr.mxu0 0.0
    %800 = vmatpush1.msra.mxu0 0.0
    %801 = vmatprep.subr.mxu0 0.0
    %802 = vmatpush1.msra.mxu0 0.0
    %803 = vmatprep.subr.mxu0 0.0
    %804 = vmatpush1.msra.mxu0 0.0
    %805 = vmatprep.subr.mxu0 0.0
    %806 = vmatpush1.msra.mxu0 0.0
    %807 = vmatprep.subr.mxu0 0.0
    %808 = vmatpush1.msra.mxu0 0.0
    %809 = vmatprep.subr.mxu0 0.0
    %810 = vmatpush1.msra.mxu0 0.0
    %811 = vmatprep.subr.mxu0 0.0
    %812 = vmatpush1.msra.mxu0 0.0
    %813 = vmatprep.subr.mxu0 0.0
    %814 = vmatpush1.msra.mxu0 0.0
    %815 = vmatprep.subr.mxu0 0.0
    %816 = vmatpush1.msra.mxu0 0.0
    %817 = vmatprep.subr.mxu0 0.0
    %818 = vmatpush1.msra.mxu0 0.0
    %819 = vmatprep.subr.mxu0 0.0
    %820 = vmatpush1.msra.mxu0 0.0
    %821 = vmatprep.subr.mxu0 0.0
    %822 = vmatpush1.msra.mxu0 0.0
    %823 = vmatprep.subr.mxu0 0.0
    %824 = vmatpush1.msra.mxu0 0.0
    %825 = vmatprep.mubr.f32.mxu0 0.0
    %v826 = vand.u32 %v510, 4294901760
    %v827 = vsub.f32 %v510, %v826
    %v828 = vand.u32 %v827, 4294901760
    %829 = vmatmul.mubr.f32.gmra.mrb[0].mxu0 %v828
    %v830 = vpop.f32.mrb[0].mxu0
    %v831 = vadd.f32 %v755, %v830
    %v832 = vpop.f32.mrb[0].mxu0
    %833 = vdwg.mxu0
    %834 = vmatprep.subr.mxu0 0.0
    %v835 = vand.u32 %v499, 4294901760
    %v836 = vsub.f32 %v499, %v835
    %v837 = vand.u32 %v836, 4294901760
    %838 = vmatpush1.msra.mxu0 %v837
    %839 = vmatprep.subr.mxu0 0.0
    %v840 = vand.u32 %v500, 4294901760
    %v841 = vsub.f32 %v500, %v840
    %v842 = vand.u32 %v841, 4294901760
    %843 = vmatpush1.msra.mxu0 %v842
    %844 = vmatprep.subr.mxu0 0.0
    %v845 = vand.u32 %v514, 4294901760
    %v846 = vsub.f32 %v514, %v845
    %v847 = vand.u32 %v846, 4294901760
    %848 = vmatpush1.msra.mxu0 %v847
    %849 = vmatprep.subr.mxu0 0.0
    %850 = vmatpush1.msra.mxu0 0.0
    %851 = vmatprep.subr.mxu0 0.0
    %852 = vmatpush1.msra.mxu0 0.0
    %853 = vmatprep.subr.mxu0 0.0
    %854 = vmatpush1.msra.mxu0 0.0
    %855 = vmatprep.subr.mxu0 0.0
    %856 = vmatpush1.msra.mxu0 0.0
    %857 = vmatprep.subr.mxu0 0.0
    %858 = vmatpush1.msra.mxu0 0.0
    %859 = vmatprep.subr.mxu0 0.0
    %860 = vmatpush1.msra.mxu0 0.0
    %861 = vmatprep.subr.mxu0 0.0
    %862 = vmatpush1.msra.mxu0 0.0
    %863 = vmatprep.subr.mxu0 0.0
    %864 = vmatpush1.msra.mxu0 0.0
    %865 = vmatprep.subr.mxu0 0.0
    %866 = vmatpush1.msra.mxu0 0.0
    %867 = vmatprep.subr.mxu0 0.0
    %868 = vmatpush1.msra.mxu0 0.0
    %869 = vmatprep.subr.mxu0 0.0
    %870 = vmatpush1.msra.mxu0 0.0
    %871 = vmatprep.subr.mxu0 0.0
    %872 = vmatpush1.msra.mxu0 0.0
    %873 = vmatprep.subr.mxu0 0.0
    %874 = vmatpush1.msra.mxu0 0.0
    %875 = vmatprep.subr.mxu0 0.0
    %876 = vmatpush1.msra.mxu0 0.0
    %877 = vmatprep.subr.mxu0 0.0
    %878 = vmatpush1.msra.mxu0 0.0
    %879 = vmatprep.subr.mxu0 0.0
    %880 = vmatpush1.msra.mxu0 0.0
    %881 = vmatprep.subr.mxu0 0.0
    %882 = vmatpush1.msra.mxu0 0.0
    %883 = vmatprep.subr.mxu0 0.0
    %884 = vmatpush1.msra.mxu0 0.0
    %885 = vmatprep.subr.mxu0 0.0
    %886 = vmatpush1.msra.mxu0 0.0
    %887 = vmatprep.subr.mxu0 0.0
    %888 = vmatpush1.msra.mxu0 0.0
    %889 = vmatprep.subr.mxu0 0.0
    %890 = vmatpush1.msra.mxu0 0.0
    %891 = vmatprep.subr.mxu0 0.0
    %892 = vmatpush1.msra.mxu0 0.0
    %893 = vmatprep.subr.mxu0 0.0
    %894 = vmatpush1.msra.mxu0 0.0
    %895 = vmatprep.subr.mxu0 0.0
    %896 = vmatpush1.msra.mxu0 0.0
    %897 = vmatprep.subr.mxu0 0.0
    %898 = vmatpush1.msra.mxu0 0.0
    %899 = vmatprep.subr.mxu0 0.0
    %900 = vmatpush1.msra.mxu0 0.0
    %901 = vmatprep.subr.mxu0 0.0
    %902 = vmatpush1.msra.mxu0 0.0
    %903 = vmatprep.subr.mxu0 0.0
    %904 = vmatpush1.msra.mxu0 0.0
    %905 = vmatprep.subr.mxu0 0.0
    %906 = vmatpush1.msra.mxu0 0.0
    %907 = vmatprep.mubr.f32.mxu0 0.0
    %v908 = vand.u32 %v510, 4294901760
    %909 = vmatmul.mubr.f32.gmra.mrb[0].mxu0 %v908
    %v910 = vpop.f32.mrb[0].mxu0
    %v911 = vadd.f32 %v831, %v910
    %v912 = vpop.f32.mrb[0].mxu0
    %913 = vdwg.mxu0
    %914 = vmatprep.subr.mxu0 0.0
    %v915 = vand.u32 %v499, 4294901760
    %916 = vmatpush1.msra.mxu0 %v915
    %917 = vmatprep.subr.mxu0 0.0
    %v918 = vand.u32 %v500, 4294901760
    %919 = vmatpush1.msra.mxu0 %v918
    %920 = vmatprep.subr.mxu0 0.0
    %v921 = vand.u32 %v514, 4294901760
    %922 = vmatpush1.msra.mxu0 %v921
    %923 = vmatprep.subr.mxu0 0.0
    %924 = vmatpush1.msra.mxu0 0.0
    %925 = vmatprep.subr.mxu0 0.0
    %926 = vmatpush1.msra.mxu0 0.0
    %927 = vmatprep.subr.mxu0 0.0
    %928 = vmatpush1.msra.mxu0 0.0
    %929 = vmatprep.subr.mxu0 0.0
    %930 = vmatpush1.msra.mxu0 0.0
    %931 = vmatprep.subr.mxu0 0.0
    %932 = vmatpush1.msra.mxu0 0.0
    %933 = vmatprep.subr.mxu0 0.0
    %934 = vmatpush1.msra.mxu0 0.0
    %935 = vmatprep.subr.mxu0 0.0
    %936 = vmatpush1.msra.mxu0 0.0
    %937 = vmatprep.subr.mxu0 0.0
    %938 = vmatpush1.msra.mxu0 0.0
    %939 = vmatprep.subr.mxu0 0.0
    %940 = vmatpush1.msra.mxu0 0.0
    %941 = vmatprep.subr.mxu0 0.0
    %942 = vmatpush1.msra.mxu0 0.0
    %943 = vmatprep.subr.mxu0 0.0
    %944 = vmatpush1.msra.mxu0 0.0
    %945 = vmatprep.subr.mxu0 0.0
    %946 = vmatpush1.msra.mxu0 0.0
    %947 = vmatprep.subr.mxu0 0.0
    %948 = vmatpush1.msra.mxu0 0.0
    %949 = vmatprep.subr.mxu0 0.0
    %950 = vmatpush1.msra.mxu0 0.0
    %951 = vmatprep.subr.mxu0 0.0
    %952 = vmatpush1.msra.mxu0 0.0
    %953 = vmatprep.subr.mxu0 0.0
    %954 = vmatpush1.msra.mxu0 0.0
    %955 = vmatprep.subr.mxu0 0.0
    %956 = vmatpush1.msra.mxu0 0.0
    %957 = vmatprep.subr.mxu0 0.0
    %958 = vmatpush1.msra.mxu0 0.0
    %959 = vmatprep.subr.mxu0 0.0
    %960 = vmatpush1.msra.mxu0 0.0
    %961 = vmatprep.subr.mxu0 0.0
    %962 = vmatpush1.msra.mxu0 0.0
    %963 = vmatprep.subr.mxu0 0.0
    %964 = vmatpush1.msra.mxu0 0.0
    %965 = vmatprep.subr.mxu0 0.0
    %966 = vmatpush1.msra.mxu0 0.0
    %967 = vmatprep.subr.mxu0 0.0
    %968 = vmatpush1.msra.mxu0 0.0
    %969 = vmatprep.subr.mxu0 0.0
    %970 = vmatpush1.msra.mxu0 0.0
    %971 = vmatprep.subr.mxu0 0.0
    %972 = vmatpush1.msra.mxu0 0.0
    %973 = vmatprep.subr.mxu0 0.0
    %974 = vmatpush1.msra.mxu0 0.0
    %975 = vmatprep.subr.mxu0 0.0
    %976 = vmatpush1.msra.mxu0 0.0
    %977 = vmatprep.subr.mxu0 0.0
    %978 = vmatpush1.msra.mxu0 0.0
    %979 = vmatprep.subr.mxu0 0.0
    %980 = vmatpush1.msra.mxu0 0.0
    %981 = vmatprep.mubr.f32.mxu0 0.0
    %v982 = vand.u32 %v510, 4294901760
    %983 = vmatmul.mubr.f32.gmra.mrb[0].mxu0 %v982
    %v984 = vpop.f32.mrb[0].mxu0
    %v985 = vadd.f32 %v911, %v984
    %v986 = vpop.f32.mrb[0].mxu0
    %987 = vdwg.mxu0
    %v988 = vxor.u32 %v985, 2147483648
    %v989 = vmul.f32 %v988, 1.442695
    %v990 = vpow.pop %v989
    %v991 = vadd.f32 %v990, 1.0
    %v992 = vrcp.pop %v991
    %v993 = vmul.f32 1.0, %v992
    %vm994 = vcmask 23552
    %995 = vst.msk [vmem:[%s6] sm:$0xff] %vm994, %v993
    // Predicated region
    $region22: #{tpu_custom_call.1} parent=1 // pred_check
      _
    $region23: #{tpu_custom_call.1} parent=1 // pred_check_branch
      %997 = sbr.rel (0) target = $region25
    $region24: #{tpu_custom_call.1} parent=1 // pred_region
      %s999 = ssub.s32 128, 128
      %1000 = vsyncadd [#allocation3], %s999
      %s1002 = sshll.u32 [#allocation2], 4
      %s1003 = int_to_ptr.vmem [resolvable:$true] %s1002
      %1005 = dma.vmem_to_hbm [thread:$0]  %s1003, 128, %s5, [#allocation3]
    $region25: #{tpu_custom_call.1} parent=1 // pred_fallthru
      _
    // Predicated region
    $region26: #{tpu_custom_call.1} parent=1 // pred_check
      _
    $region27: #{tpu_custom_call.1} parent=1 // pred_check_branch
      %1007 = sbr.rel (0) target = $region29
    $region28: #{tpu_custom_call.1} parent=1 // pred_region
      _
    $region29: #{tpu_custom_call.1} parent=1 // pred_fallthru
      _
    // Predicated region
    $region30: #{tpu_custom_call.1} parent=1 // pred_check
      _
    $region31: #{tpu_custom_call.1} parent=1 // pred_check_branch
      %1009 = sbr.rel (0) target = $region33
    $region32: #{tpu_custom_call.1} parent=1 // pred_region
      %1010 = dma.done [#allocation3], 128
    $region33: #{tpu_custom_call.1} parent=1 // pred_fallthru
      _
    // Predicated region
    $region34: #{tpu_custom_call.1} parent=1 // pred_check
      _
    $region35: #{tpu_custom_call.1} parent=1 // pred_check_branch
      %1012 = sbr.rel (0) target = $region37
    $region36: #{tpu_custom_call.1} parent=1 // pred_region
      _
    $region37: #{tpu_custom_call.1} parent=1 // pred_fallthru
      _
    %1013 = vsyncpa [#allocation3], 1

</llo_original>
